<compile_context>
chip_gen: v7x
topology: tpu7x:2x2x1
jax: 0.10.0
libtpu: 0.0.40
codegen_flags: <defaults>
</compile_context>

<pallas_src>
import functools

import jax
import jax.numpy as jnp
from jax.experimental import pallas as pl
from jax.experimental.pallas import tpu as pltpu

# ----------------------------- configuration --------------------------------
IN_FEATURES = 32
HIDS = [32, 32]          # one hidden size per hop (matches len(SIZES))
OUT_FEATURES = 16
SIZES = [5, 2]           # neighbor fan-out per hop
P_MIX = 0.5              # sampler mix fraction (self.p)
TIME_STEP = 2            # number of temporal snapshots (len(adj_evolve))
NUM_TOTAL_NODES = 64
NUM_SEED_NODES = 8
V_THRESHOLD = 1.0

_VMEM_SPEC = pl.BlockSpec(memory_space=pltpu.MemorySpace.VMEM)


# ------------------------------ fused Pallas kernel ---------------------------
def _spikenet_fused_kernel(h_ref, p_ref, w_ref, b_ref, out_ref, *,
                           num_nodes, hids, num_snapshots, in_features,
                           out_features, v_threshold):
    """Whole SpikeNet forward (all snapshots, all hop levels, pooling) in VMEM.

    h_ref : (sum(num_nodes), T*F) bf16  — per-snapshot gathered features,
            rows ordered [seed | hop-1 nbrs | hop-2 nbrs | ...], snapshots
            packed along lanes.
    p_ref : (sum_i keep_i, 128) bf16    — row-stacked block-diagonal neighbor
            averaging matrices (1/S folded in, zero cols over self rows,
            lane-padded).
    w_ref : (2*T*F*L + T*H, W) bf16     — row-stacked per-level fused
            block(Wl, Wr) weights + lane-padded pooling weight Wp.
    b_ref : (L+1, W) f32                — per-level packed biases (bl+br tiled
            over T) + lane-padded pooling bias bp.
    out_ref : (seeds, OUT) f32
    """
    L = len(hids)
    T = num_snapshots
    cur = h_ref[...]                          # (R0, T*F) bf16, stays in vregs/VMEM
    total = cur.shape[0]
    f = in_features
    p_row = 0
    w_row = 0

    # Static Python unroll over hop levels (tiny trip count); all snapshots are
    # processed at once via the lane packing.
    for i in range(L):
        h = hids[i]
        keep = total - num_nodes[L - i]
        # aggr='mean' over neighbor fan-out groups on the MXU via the
        # block-diagonal averaging matrix (covers all T snapshots at once).
        p_view = p_ref[p_row:p_row + keep, 0:total]               # (keep, total)
        neigh_mean = jnp.dot(p_view, cur,
                             preferred_element_type=jnp.float32)  # (keep, T*f)
        # lin_l + lin_r fused into a single MXU op: [self | neigh_mean] @ Wfused.
        packed = jnp.concatenate(
            [cur[:keep, :], neigh_mean.astype(jnp.bfloat16)], axis=-1)
        w_view = w_ref[w_row:w_row + 2 * T * f, 0:T * h]          # (2*T*f, T*h)
        pre = (jnp.dot(packed, w_view, preferred_element_type=jnp.float32)
               + b_ref[i:i + 1, 0:T * h])                         # f32
        # LIF with tau=1: v <- dv, spike = heaviside(v - v_threshold);
        # inter-layer nn.Dropout(p=0.7) is identity in eval mode.
        cur = (pre >= v_threshold).astype(jnp.bfloat16)
        total = keep
        p_row += keep
        w_row += 2 * T * f
        f = h

    # Pooling: cur is already the lane-wise concat of per-snapshot spikes
    # (seeds, T*H) — a single matmul against Wp.
    wp_view = w_ref[w_row:w_row + T * f, 0:out_features]          # (T*H, OUT)
    bp_view = b_ref[L:L + 1, 0:out_features]                      # (1, OUT)
    out_ref[...] = (jnp.dot(cur, wp_view, preferred_element_type=jnp.float32)
                    + bp_view)


def spikenet_fused_call(h_packed, p_slab, w_slab, b_slab, num_nodes,
                        num_snapshots):
    seeds = int(num_nodes[0])
    kernel = functools.partial(
        _spikenet_fused_kernel,
        num_nodes=tuple(int(n) for n in num_nodes),
        hids=tuple(HIDS),
        num_snapshots=int(num_snapshots),
        in_features=IN_FEATURES,
        out_features=OUT_FEATURES,
        v_threshold=V_THRESHOLD,
    )
    return pl.pallas_call(
        kernel,
        out_shape=jax.ShapeDtypeStruct((seeds, OUT_FEATURES), jnp.float32),
        in_specs=[_VMEM_SPEC] * 4,
        out_specs=_VMEM_SPEC,
    )(h_packed, p_slab, w_slab, b_slab)


# ------------------------------ parameter init -------------------------------
def _init_linear(key, fan_in, fan_out):
    """Deterministic nn.Linear-style init: U(-1/sqrt(fan_in), 1/sqrt(fan_in))."""
    kw, kb = jax.random.split(key)
    bound = 1.0 / jnp.sqrt(jnp.float32(fan_in))
    w = jax.random.uniform(kw, (fan_in, fan_out), jnp.float32, -bound, bound)
    b = jax.random.uniform(kb, (1, fan_out), jnp.float32, -bound, bound)
    return w, b


def init_params(key):
    params = {"aggr": [], "pooling": None}
    in_f = IN_FEATURES
    for hid in HIDS:
        key, kl, kr = jax.random.split(key, 3)
        wl, bl = _init_linear(kl, in_f, hid)   # lin_l (self path)
        wr, br = _init_linear(kr, in_f, hid)   # lin_r (neighbor path)
        params["aggr"].append((wl, bl, wr, br))
        in_f = hid                             # concat=False
    key, kp = jax.random.split(key)
    params["pooling"] = _init_linear(kp, TIME_STEP * in_f, OUT_FEATURES)
    return params


# --------------------- neighbor-averaging (aggr='mean') slab ------------------
def _neighbor_mean_slab(num_nodes, sizes):
    """Row-stacked, lane-padded block-diagonal averaging matrices P_i such that
    P_i @ cur_i == cat of per-level neighbor means (1/S folded in).  Columns
    covering the self (seed-of-level) rows are zero, so each P_i can multiply
    the FULL current feature slab without row slicing."""
    L = len(sizes)
    mats = []
    for i in range(L):
        n_blocks = L - i
        rows = sum(num_nodes[:n_blocks])
        cols = sum(num_nodes[:n_blocks + 1])
        mat = jnp.zeros((rows, cols), jnp.float32)
        r0 = 0
        c0 = num_nodes[0]                      # skip (zero) self-row columns
        for j in range(n_blocks):
            blk = (jnp.repeat(jnp.eye(num_nodes[j], dtype=jnp.float32),
                              sizes[j], axis=1) * (1.0 / float(sizes[j])))
            mat = mat.at[r0:r0 + num_nodes[j],
                         c0:c0 + num_nodes[j] * sizes[j]].set(blk)
            r0 += num_nodes[j]
            c0 += num_nodes[j] * sizes[j]
        mats.append(mat)
    width = max(m.shape[1] for m in mats)      # lane-pad to the widest level
    padded = [jnp.pad(m, ((0, 0), (0, width - m.shape[1]))) for m in mats]
    return jnp.concatenate(padded, axis=0).astype(jnp.bfloat16)


# --------------------------- packed weight / bias slabs -----------------------
def _packed_weight_slabs(params, num_snapshots):
    """Build the fused block-diagonal (T-replicated) weights and collapse all
    weights / biases into two lane-padded slabs."""
    T = num_snapshots
    w_blocks, b_rows = [], []
    in_f = IN_FEATURES
    for i, (wl, bl, wr, br) in enumerate(params["aggr"]):
        h = HIDS[i]
        # W_fused: rows = [self lanes (T blocks of Wl) | neigh lanes (T of Wr)]
        wf = jnp.zeros((2 * T * in_f, T * h), jnp.float32)
        for t in range(T):
            wf = wf.at[t * in_f:(t + 1) * in_f, t * h:(t + 1) * h].set(wl)
            wf = wf.at[T * in_f + t * in_f:T * in_f + (t + 1) * in_f,
                       t * h:(t + 1) * h].set(wr)
        w_blocks.append(wf)
        b_rows.append(jnp.tile((bl + br).reshape(1, h), (1, T)))  # bl+br, packed
        in_f = h
    wp, bp = params["pooling"]
    # Missing snapshots (num_snapshots < TIME_STEP): the reference zero-pads
    # the spike features before pooling; zero features contribute nothing, so
    # using only the first T*H rows of Wp is equivalent.
    w_blocks.append(wp[:T * in_f, :])
    b_rows.append(bp)

    w_width = max(b.shape[1] for b in w_blocks)
    b_width = max(b.shape[1] for b in b_rows)
    w_slab = jnp.concatenate(
        [jnp.pad(b, ((0, 0), (0, w_width - b.shape[1]))) for b in w_blocks],
        axis=0).astype(jnp.bfloat16)
    b_slab = jnp.concatenate(
        [jnp.pad(b, ((0, 0), (0, b_width - b.shape[1]))) for b in b_rows],
        axis=0).astype(jnp.float32)
    return w_slab, b_slab


# ------------------------------- forward (jitted) -----------------------------
@jax.jit
def spikenet_forward(params, nodes, graphs_x, sampler_key):
    """graphs_x: list (len <= TIME_STEP) of per-snapshot feature matrices [N_total, F]."""
    num_snapshots = len(graphs_x)
    num_seed = int(nodes.shape[0])

    # Static hop population counts: [B, B*S0, B*S0*S1, ...]
    num_nodes = [num_seed]
    for size in SIZES:
        num_nodes.append(num_nodes[-1] * size)

    # Averaging matrices are static (shape-only); constant-folded under jit.
    p_slab = _neighbor_mean_slab(num_nodes, SIZES)

    key = sampler_key
    h_cols = []
    for t in range(num_snapshots):
        x = graphs_x[t]
        idx_levels = [nodes]
        nbr = nodes
        # TODO(synk): adjacency-based Sampler / RandomWalkSampler replaced by
        # deterministic uniform node-index sampling (same shapes / row order).
        for size in SIZES:
            size_1 = max(int(size * P_MIX), 1)
            size_2 = size - size_1
            key, k1, k2 = jax.random.split(key, 3)
            if size_2 > 0:
                nbr_1 = jax.random.randint(k1, (nbr.shape[0], size_1), 0, x.shape[0])
                nbr_2 = jax.random.randint(k2, (nbr.shape[0], size_2), 0, x.shape[0])
                nbr = jnp.concatenate([nbr_1, nbr_2], axis=1).reshape(-1)
            else:
                nbr = jax.random.randint(k1, (nbr.shape[0] * size_1,), 0, x.shape[0])
            idx_levels.append(nbr)
        all_idx = jnp.concatenate(idx_levels, axis=0)
        h_cols.append(x[all_idx])              # one gather per snapshot: (sum(num_nodes), F)

    # Lane-pack the T snapshots into one bf16 feature slab (sum(num_nodes), T*F).
    h_packed = jnp.concatenate(h_cols, axis=1).astype(jnp.bfloat16)

    w_slab, b_slab = _packed_weight_slabs(params, num_snapshots)

    return spikenet_fused_call(h_packed, p_slab, w_slab, b_slab,
                               num_nodes, num_snapshots)


# ----------------------------------- main -------------------------------------
if __name__ == "__main__":
    root = jax.random.PRNGKey(0)
    k_params, k_data, k_nodes, k_sampler = jax.random.split(root, 4)

    params = init_params(k_params)

    data_keys = jax.random.split(k_data, TIME_STEP)
    graphs_x = [
        jax.random.normal(data_keys[t], (NUM_TOTAL_NODES, IN_FEATURES), jnp.float32)
        for t in range(TIME_STEP)
    ]
    nodes = jax.random.randint(k_nodes, (NUM_SEED_NODES,), 0, NUM_TOTAL_NODES)

    out = spikenet_forward(params, nodes, graphs_x, k_sampler)
    out = jax.block_until_ready(out)

    assert out.shape == (NUM_SEED_NODES, OUT_FEATURES), out.shape
    assert out.dtype == jnp.float32
    print("KERNEL_OK")
</pallas_src>

<mosaic_0001>
module attributes {stable_mosaic.version = 11 : i64} {
  func.func @_spikenet_fused_kernel(%arg0: memref<128x64xbf16, #tpu.memory_space<vmem>>, %arg1: memref<56x128xbf16, #tpu.memory_space<vmem>>, %arg2: memref<320x64xbf16, #tpu.memory_space<vmem>>, %arg3: memref<3x64xf32, #tpu.memory_space<vmem>>, %arg4: memref<8x16xf32, #tpu.memory_space<vmem>>) attributes {dimension_semantics = [], scalar_prefetch = 0 : i64, scratch_operands = 0 : i64, tpu.core_type = #tpu.core_type<tc>} {
    %c0 = arith.constant 0 : index
    %c0_0 = arith.constant 0 : index
    %0 = vector.load %arg0[%c0, %c0_0] : memref<128x64xbf16, #tpu.memory_space<vmem>>, vector<128x64xbf16>
    %c0_1 = arith.constant 0 : index
    %c0_2 = arith.constant 0 : index
    %1 = vector.load %arg1[%c0_1, %c0_2] : memref<56x128xbf16, #tpu.memory_space<vmem>>, vector<48x128xbf16>
    %cst = arith.constant dense<0.000000e+00> : vector<48x64xf32>
    %2 = tpu.matmul %1, %0, %cst {dimension_numbers = #tpu.dot_dimension_numbers<[1], [0], [0], [1], [0, 0, 1, 1], [], []>} : vector<48x128xbf16>, vector<128x64xbf16>, vector<48x64xf32> -> vector<48x64xf32>
    %3 = vector.extract_strided_slice %0 {offsets = [0, 0], sizes = [48, 64], strides = [1, 1]} : vector<128x64xbf16> to vector<48x64xbf16>
    %4 = arith.truncf %2 : vector<48x64xf32> to vector<48x64xbf16>
    %5 = tpu.concatenate %3, %4 in 1 : vector<48x64xbf16>, vector<48x64xbf16> -> vector<48x128xbf16>
    %c0_3 = arith.constant 0 : index
    %c0_4 = arith.constant 0 : index
    %6 = vector.load %arg2[%c0_3, %c0_4] : memref<320x64xbf16, #tpu.memory_space<vmem>>, vector<128x64xbf16>
    %cst_5 = arith.constant dense<0.000000e+00> : vector<48x64xf32>
    %7 = tpu.matmul %5, %6, %cst_5 {dimension_numbers = #tpu.dot_dimension_numbers<[1], [0], [0], [1], [0, 0, 1, 1], [], []>} : vector<48x128xbf16>, vector<128x64xbf16>, vector<48x64xf32> -> vector<48x64xf32>
    %c0_6 = arith.constant 0 : index
    %c0_7 = arith.constant 0 : index
    %8 = vector.load %arg3[%c0_6, %c0_7] : memref<3x64xf32, #tpu.memory_space<vmem>>, vector<1x64xf32>
    %9 = vector.broadcast %8 : vector<1x64xf32> to vector<48x64xf32>
    %10 = arith.addf %7, %9 : vector<48x64xf32>
    %cst_8 = arith.constant 1.000000e+00 : f32
    %11 = vector.broadcast %cst_8 : f32 to vector<48x64xf32>
    %12 = arith.cmpf oge, %10, %11 : vector<48x64xf32>
    %13 = arith.extui %12 : vector<48x64xi1> to vector<48x64xi32>
    %14 = arith.sitofp %13 : vector<48x64xi32> to vector<48x64xf32>
    %15 = arith.truncf %14 : vector<48x64xf32> to vector<48x64xbf16>
    %c48 = arith.constant 48 : index
    %c0_9 = arith.constant 0 : index
    %16 = vector.load %arg1[%c48, %c0_9] : memref<56x128xbf16, #tpu.memory_space<vmem>>, vector<8x48xbf16>
    %cst_10 = arith.constant dense<0.000000e+00> : vector<8x64xf32>
    %17 = tpu.matmul %16, %15, %cst_10 {dimension_numbers = #tpu.dot_dimension_numbers<[1], [0], [0], [1], [0, 0, 1, 1], [], []>} : vector<8x48xbf16>, vector<48x64xbf16>, vector<8x64xf32> -> vector<8x64xf32>
    %18 = vector.extract_strided_slice %15 {offsets = [0, 0], sizes = [8, 64], strides = [1, 1]} : vector<48x64xbf16> to vector<8x64xbf16>
    %19 = arith.truncf %17 : vector<8x64xf32> to vector<8x64xbf16>
    %20 = tpu.concatenate %18, %19 in 1 : vector<8x64xbf16>, vector<8x64xbf16> -> vector<8x128xbf16>
    %c128 = arith.constant 128 : index
    %c0_11 = arith.constant 0 : index
    %21 = vector.load %arg2[%c128, %c0_11] : memref<320x64xbf16, #tpu.memory_space<vmem>>, vector<128x64xbf16>
    %cst_12 = arith.constant dense<0.000000e+00> : vector<8x64xf32>
    %22 = tpu.matmul %20, %21, %cst_12 {dimension_numbers = #tpu.dot_dimension_numbers<[1], [0], [0], [1], [0, 0, 1, 1], [], []>} : vector<8x128xbf16>, vector<128x64xbf16>, vector<8x64xf32> -> vector<8x64xf32>
    %c1 = arith.constant 1 : index
    %c0_13 = arith.constant 0 : index
    %23 = vector.load %arg3[%c1, %c0_13] : memref<3x64xf32, #tpu.memory_space<vmem>>, vector<1x64xf32>
    %24 = vector.broadcast %23 : vector<1x64xf32> to vector<8x64xf32>
    %25 = arith.addf %22, %24 : vector<8x64xf32>
    %cst_14 = arith.constant 1.000000e+00 : f32
    %26 = vector.broadcast %cst_14 : f32 to vector<8x64xf32>
    %27 = arith.cmpf oge, %25, %26 : vector<8x64xf32>
    %28 = arith.extui %27 : vector<8x64xi1> to vector<8x64xi32>
    %29 = arith.sitofp %28 : vector<8x64xi32> to vector<8x64xf32>
    %30 = arith.truncf %29 : vector<8x64xf32> to vector<8x64xbf16>
    %c256 = arith.constant 256 : index
    %c0_15 = arith.constant 0 : index
    %31 = vector.load %arg2[%c256, %c0_15] : memref<320x64xbf16, #tpu.memory_space<vmem>>, vector<64x16xbf16>
    %c2 = arith.constant 2 : index
    %c0_16 = arith.constant 0 : index
    %32 = vector.load %arg3[%c2, %c0_16] : memref<3x64xf32, #tpu.memory_space<vmem>>, vector<1x16xf32>
    %cst_17 = arith.constant dense<0.000000e+00> : vector<8x16xf32>
    %33 = tpu.matmul %30, %31, %cst_17 {dimension_numbers = #tpu.dot_dimension_numbers<[1], [0], [0], [1], [0, 0, 1, 1], [], []>} : vector<8x64xbf16>, vector<64x16xbf16>, vector<8x16xf32> -> vector<8x16xf32>
    %34 = vector.broadcast %32 : vector<1x16xf32> to vector<8x16xf32>
    %35 = arith.addf %33, %34 : vector<8x16xf32>
    %c0_18 = arith.constant 0 : index
    %c0_19 = arith.constant 0 : index
    %36 = vector.load %arg4[%c0_18, %c0_19] : memref<8x16xf32, #tpu.memory_space<vmem>>, vector<8x16xf32>
    tpu.vector_store %arg4[%c0_18, %c0_19], %35 {strides = array<i32>} : memref<8x16xf32, #tpu.memory_space<vmem>>, vector<8x16xf32>,
    return
  }
}

</mosaic_0001>

<llo_original>
// kernel: spikenet_forward.1
$region0: #{spikenet_forward.1}
  #allocation0 [shape = 'u32[]', space=smem, size = 0x4, offset = 0x4, fixed_abs, tag = 'smem constant byte address 0x4 - core index']
  #allocation1 [shape = 'u32[144,128]{1,0:T(1,128)}', space=vmem, size = 0x12000, scoped, tag = 'internal scratch']
  %s0 = inlined_call_operand.vmem [shape: bf16[128,64], index: 0, kind: input, shape index: {}]
  %s1 = inlined_call_operand.vmem [shape: bf16[56,128], index: 1, kind: input, shape index: {}]
  %s2 = inlined_call_operand.vmem [shape: bf16[320,64], index: 2, kind: input, shape index: {}]
  %s3 = inlined_call_operand.vmem [shape: f32[3,64], index: 3, kind: input, shape index: {}]
  %s4 = inlined_call_operand.hbm [shape: f32[8,16], index: 4, kind: output, shape index: {}]
  %s5 = sld [smem:[#allocation0]]
  $region26: #{spikenet_forward.1} parent=0
    _
  %s7 = ssub.s32 1, %s5
  %s8 = scalar_select 0, %s7, %s5
  $region1: #{spikenet_forward.1} parent=0
    #allocation2 [shape = 'u8[4096]{0}', space=vmem, size = 0x1000, scoped, tag = 'output window, operand 0, single buffered']
    #allocation3 [shape = 's32[1]{0}', space=sflag, size = 0x4, scoped, tag = 'scoped memory for spikenet_forward.1']
    %9 = vsyncpa [#allocation3], 0
    // Predicated region
    $region2: #{spikenet_forward.1} parent=1 // pred_check
      _
    $region3: #{spikenet_forward.1} parent=1 // pred_check_branch
      %11 = sbr.rel (0) target = $region5
    $region4: #{spikenet_forward.1} parent=1 // pred_region
      _
    $region5: #{spikenet_forward.1} parent=1 // pred_fallthru
      _
    // Predicated region
    $region6: #{spikenet_forward.1} parent=1 // pred_check
      _
    $region7: #{spikenet_forward.1} parent=1 // pred_check_branch
      %13 = sbr.rel (0) target = $region9
    $region8: #{spikenet_forward.1} parent=1 // pred_region
      _
    $region9: #{spikenet_forward.1} parent=1 // pred_fallthru
      _
    // Predicated region
    $region10: #{spikenet_forward.1} parent=1 // pred_check
      _
    $region11: #{spikenet_forward.1} parent=1 // pred_check_branch
      %15 = sbr.rel (0) target = $region13
    $region12: #{spikenet_forward.1} parent=1 // pred_region
      _
    $region13: #{spikenet_forward.1} parent=1 // pred_fallthru
      _
    // Predicated region
    $region14: #{spikenet_forward.1} parent=1 // pred_check
      _
    $region15: #{spikenet_forward.1} parent=1 // pred_check_branch
      %17 = sbr.rel (0) target = $region17
    $region16: #{spikenet_forward.1} parent=1 // pred_region
      _
    $region17: #{spikenet_forward.1} parent=1 // pred_fallthru
      _
    %v19 = vld [vmem:[%s0] sm:$0xf]
    %v20 = vld [vmem:[%s0 + $0x4] sm:$0xf]
    %v21 = vld [vmem:[%s0 + $0x8] sm:$0xf]
    %v22 = vld [vmem:[%s0 + $0xc] sm:$0xf]
    %v23 = vld [vmem:[%s0 + $0x10] sm:$0xf]
    %v24 = vld [vmem:[%s0 + $0x14] sm:$0xf]
    %v25 = vld [vmem:[%s0 + $0x18] sm:$0xf]
    %v26 = vld [vmem:[%s0 + $0x1c] sm:$0xf]
    %v27 = vld [vmem:[%s0 + $0x20] sm:$0xf]
    %v28 = vld [vmem:[%s0 + $0x24] sm:$0xf]
    %v29 = vld [vmem:[%s0 + $0x28] sm:$0xf]
    %v30 = vld [vmem:[%s0 + $0x2c] sm:$0xf]
    %v31 = vld [vmem:[%s0 + $0x30] sm:$0xf]
    %v32 = vld [vmem:[%s0 + $0x34] sm:$0xf]
    %v33 = vld [vmem:[%s0 + $0x38] sm:$0xf]
    %v34 = vld [vmem:[%s0 + $0x3c] sm:$0xf]
    %v35 = vld [vmem:[%s1] sm:$0xf]
    %v36 = vld [vmem:[%s1 + $0x4] sm:$0xf]
    %v37 = vld [vmem:[%s1 + $0x8] sm:$0xf]
    %v38 = vld [vmem:[%s1 + $0xc] sm:$0xf]
    %v39 = vld [vmem:[%s1 + $0x10] sm:$0xf]
    %v40 = vld [vmem:[%s1 + $0x14] sm:$0xf]
    %v47 = vunpack.c.l.b16 %v35
    %v48 = vunpack.c.l.b16 %v36
    %v49 = vunpack.c.l.b16 %v37
    %v50 = vunpack.c.l.b16 %v38
    %v51 = vunpack.c.l.b16 %v39
    %v52 = vunpack.c.l.b16 %v40
    %v53 = vpack.c.b16 %v48, %v47
    %v54 = vpack.c.b16 %v50, %v49
    %v55 = vpack.c.b16 %v52, %v51
    %v75 = vunpack.c.l.b16 %v19
    %v76 = vunpack.c.l.b16 %v20
    %v77 = vunpack.c.l.b16 %v21
    %v78 = vunpack.c.l.b16 %v22
    %v79 = vunpack.c.l.b16 %v23
    %v80 = vunpack.c.l.b16 %v24
    %v81 = vunpack.c.l.b16 %v25
    %v82 = vunpack.c.l.b16 %v26
    %v83 = vunpack.c.l.b16 %v27
    %v84 = vunpack.c.l.b16 %v28
    %v85 = vunpack.c.l.b16 %v29
    %v86 = vunpack.c.l.b16 %v30
    %v87 = vunpack.c.l.b16 %v31
    %v88 = vunpack.c.l.b16 %v32
    %v89 = vunpack.c.l.b16 %v33
    %v90 = vunpack.c.l.b16 %v34
    %v91 = vpack.c.b16 %v76, %v75
    %v92 = vpack.c.b16 %v78, %v77
    %v93 = vpack.c.b16 %v80, %v79
    %v94 = vpack.c.b16 %v82, %v81
    %v95 = vpack.c.b16 %v84, %v83
    %v96 = vpack.c.b16 %v86, %v85
    %v97 = vpack.c.b16 %v88, %v87
    %v98 = vpack.c.b16 %v90, %v89
    %107 = vmatprep.subr.bf16.mxu0 0
    %108 = vmatpush1.bf16.msra.mxu0 %v91
    %109 = vmatprep.subr.bf16.mxu0 0
    %110 = vmatpush1.bf16.msra.mxu0 %v92
    %111 = vmatprep.subr.bf16.mxu0 0
    %112 = vmatpush1.bf16.msra.mxu0 %v93
    %113 = vmatprep.subr.bf16.mxu0 0
    %114 = vmatpush1.bf16.msra.mxu0 %v94
    %115 = vmatprep.subr.bf16.mxu0 0
    %116 = vmatpush1.bf16.msra.mxu0 %v95
    %117 = vmatprep.subr.bf16.mxu0 0
    %118 = vmatpush1.bf16.msra.mxu0 %v96
    %119 = vmatprep.subr.bf16.mxu0 0
    %120 = vmatpush1.bf16.msra.mxu0 %v97
    %121 = vmatprep.subr.bf16.mxu0 0
    %122 = vmatpush1.bf16.msra.mxu0 %v98
    %123 = vmatprep.subr.bf16.mxu0 0
    %124 = vmatpush1.bf16.msra.mxu0 0
    %125 = vmatprep.subr.bf16.mxu0 0
    %126 = vmatpush1.bf16.msra.mxu0 0
    %127 = vmatprep.subr.bf16.mxu0 0
    %128 = vmatpush1.bf16.msra.mxu0 0
    %129 = vmatprep.subr.bf16.mxu0 0
    %130 = vmatpush1.bf16.msra.mxu0 0
    %131 = vmatprep.subr.bf16.mxu0 0
    %132 = vmatpush1.bf16.msra.mxu0 0
    %133 = vmatprep.subr.bf16.mxu0 0
    %134 = vmatpush1.bf16.msra.mxu0 0
    %135 = vmatprep.subr.bf16.mxu0 0
    %136 = vmatpush1.bf16.msra.mxu0 0
    %137 = vmatprep.subr.bf16.mxu0 0
    %138 = vmatpush1.bf16.msra.mxu0 0
    %139 = vmatprep.mubr.bf16.mxu0 0
    %140 = vmatmul.mubr.bf16.gmra.mrb[0].mxu0 %v53
    %v141 = vpop.f32.mrb[0].mxu0
    %v142 = vadd.f32 0.0, %v141
    %v143 = vpop.f32.mrb[0].mxu0
    %v144 = vpop.f32.mrb[0].mxu0
    %v145 = vadd.f32 0.0, %v144
    %v146 = vpop.f32.mrb[0].mxu0
    %147 = vmatprep.mubr.bf16.mxu0 0
    %148 = vmatmul.mubr.bf16.gmra.mrb[0].mxu0 %v54
    %v149 = vpop.f32.mrb[0].mxu0
    %v150 = vadd.f32 0.0, %v149
    %v151 = vpop.f32.mrb[0].mxu0
    %v152 = vpop.f32.mrb[0].mxu0
    %v153 = vadd.f32 0.0, %v152
    %v154 = vpop.f32.mrb[0].mxu0
    %155 = vmatprep.mubr.bf16.mxu0 0
    %156 = vmatmul.mubr.bf16.gmra.mrb[0].mxu0 %v55
    %v157 = vpop.f32.mrb[0].mxu0
    %v158 = vadd.f32 0.0, %v157
    %v159 = vpop.f32.mrb[0].mxu0
    %v160 = vpop.f32.mrb[0].mxu0
    %v161 = vadd.f32 0.0, %v160
    %v162 = vpop.f32.mrb[0].mxu0
    %163 = vdwg.mxu0
    %v164 = vpack.c.bf16 %v145, %v142
    %v165 = vpack.c.bf16 %v153, %v150
    %v166 = vpack.c.bf16 %v161, %v158
    %170 = vrot.lane.b32.xlu0 %v164, 64
    %v171 = vpop.permute.xlu0 %170
    %172 = vrot.lane.b32.xlu0 %v165, 64
    %v173 = vpop.permute.xlu0 %172
    %174 = vrot.lane.b32.xlu0 %v166, 64
    %v175 = vpop.permute.xlu0 %174
    %vm176 = vcmask 523264
    %v179 = vsel %vm176, %v91, %v171
    %v183 = vsel %vm176, %v92, %v173
    %v187 = vsel %vm176, %v93, %v175
    %v189 = vld [vmem:[%s2] sm:$0xf]
    %v190 = vld [vmem:[%s2 + $0x4] sm:$0xf]
    %v191 = vld [vmem:[%s2 + $0x8] sm:$0xf]
    %v192 = vld [vmem:[%s2 + $0xc] sm:$0xf]
    %v193 = vld [vmem:[%s2 + $0x10] sm:$0xf]
    %v194 = vld [vmem:[%s2 + $0x14] sm:$0xf]
    %v195 = vld [vmem:[%s2 + $0x18] sm:$0xf]
    %v196 = vld [vmem:[%s2 + $0x1c] sm:$0xf]
    %v197 = vld [vmem:[%s2 + $0x20] sm:$0xf]
    %v198 = vld [vmem:[%s2 + $0x24] sm:$0xf]
    %v199 = vld [vmem:[%s2 + $0x28] sm:$0xf]
    %v200 = vld [vmem:[%s2 + $0x2c] sm:$0xf]
    %v201 = vld [vmem:[%s2 + $0x30] sm:$0xf]
    %v202 = vld [vmem:[%s2 + $0x34] sm:$0xf]
    %v203 = vld [vmem:[%s2 + $0x38] sm:$0xf]
    %v204 = vld [vmem:[%s2 + $0x3c] sm:$0xf]
    %v205 = vld [vmem:[%s3] sm:$0x1]
    %v206 = vlaneseq
    %v207 = vshrl.u32 %v206, 7
    %v208 = vsub.s32 0, %v207
    %v209 = vrot.slane %v205, %v208
    %v226 = vunpack.c.l.b16 %v189
    %v227 = vunpack.c.l.b16 %v190
    %v228 = vunpack.c.l.b16 %v191
    %v229 = vunpack.c.l.b16 %v192
    %v230 = vunpack.c.l.b16 %v193
    %v231 = vunpack.c.l.b16 %v194
    %v232 = vunpack.c.l.b16 %v195
    %v233 = vunpack.c.l.b16 %v196
    %v234 = vunpack.c.l.b16 %v197
    %v235 = vunpack.c.l.b16 %v198
    %v236 = vunpack.c.l.b16 %v199
    %v237 = vunpack.c.l.b16 %v200
    %v238 = vunpack.c.l.b16 %v201
    %v239 = vunpack.c.l.b16 %v202
    %v240 = vunpack.c.l.b16 %v203
    %v241 = vunpack.c.l.b16 %v204
    %v242 = vpack.c.b16 %v227, %v226
    %v243 = vpack.c.b16 %v229, %v228
    %v244 = vpack.c.b16 %v231, %v230
    %v245 = vpack.c.b16 %v233, %v232
    %v246 = vpack.c.b16 %v235, %v234
    %v247 = vpack.c.b16 %v237, %v236
    %v248 = vpack.c.b16 %v239, %v238
    %v249 = vpack.c.b16 %v241, %v240
    %258 = vmatprep.subr.bf16.mxu0 0
    %259 = vmatpush1.bf16.msra.mxu0 %v242
    %260 = vmatprep.subr.bf16.mxu0 0
    %261 = vmatpush1.bf16.msra.mxu0 %v243
    %262 = vmatprep.subr.bf16.mxu0 0
    %263 = vmatpush1.bf16.msra.mxu0 %v244
    %264 = vmatprep.subr.bf16.mxu0 0
    %265 = vmatpush1.bf16.msra.mxu0 %v245
    %266 = vmatprep.subr.bf16.mxu0 0
    %267 = vmatpush1.bf16.msra.mxu0 %v246
    %268 = vmatprep.subr.bf16.mxu0 0
    %269 = vmatpush1.bf16.msra.mxu0 %v247
    %270 = vmatprep.subr.bf16.mxu0 0
    %271 = vmatpush1.bf16.msra.mxu0 %v248
    %272 = vmatprep.subr.bf16.mxu0 0
    %273 = vmatpush1.bf16.msra.mxu0 %v249
    %274 = vmatprep.subr.bf16.mxu0 0
    %275 = vmatpush1.bf16.msra.mxu0 0
    %276 = vmatprep.subr.bf16.mxu0 0
    %277 = vmatpush1.bf16.msra.mxu0 0
    %278 = vmatprep.subr.bf16.mxu0 0
    %279 = vmatpush1.bf16.msra.mxu0 0
    %280 = vmatprep.subr.bf16.mxu0 0
    %281 = vmatpush1.bf16.msra.mxu0 0
    %282 = vmatprep.subr.bf16.mxu0 0
    %283 = vmatpush1.bf16.msra.mxu0 0
    %284 = vmatprep.subr.bf16.mxu0 0
    %285 = vmatpush1.bf16.msra.mxu0 0
    %286 = vmatprep.subr.bf16.mxu0 0
    %287 = vmatpush1.bf16.msra.mxu0 0
    %288 = vmatprep.subr.bf16.mxu0 0
    %289 = vmatpush1.bf16.msra.mxu0 0
    %290 = vmatprep.mubr.bf16.mxu0 0
    %291 = vmatmul.mubr.bf16.gmra.mrb[0].mxu0 %v179
    %v292 = vpop.f32.mrb[0].mxu0
    %v293 = vadd.f32 %v209, %v292
    %v294 = vpop.f32.mrb[0].mxu0
    %v295 = vpop.f32.mrb[0].mxu0
    %v296 = vadd.f32 %v209, %v295
    %v297 = vpop.f32.mrb[0].mxu0
    %298 = vmatprep.mubr.bf16.mxu0 0
    %299 = vmatmul.mubr.bf16.gmra.mrb[0].mxu0 %v183
    %v300 = vpop.f32.mrb[0].mxu0
    %v301 = vadd.f32 %v209, %v300
    %v302 = vpop.f32.mrb[0].mxu0
    %v303 = vpop.f32.mrb[0].mxu0
    %v304 = vadd.f32 %v209, %v303
    %v305 = vpop.f32.mrb[0].mxu0
    %306 = vmatprep.mubr.bf16.mxu0 0
    %307 = vmatmul.mubr.bf16.gmra.mrb[0].mxu0 %v187
    %v308 = vpop.f32.mrb[0].mxu0
    %v309 = vadd.f32 %v209, %v308
    %v310 = vpop.f32.mrb[0].mxu0
    %v311 = vpop.f32.mrb[0].mxu0
    %v312 = vadd.f32 %v209, %v311
    %v313 = vpop.f32.mrb[0].mxu0
    %314 = vdwg.mxu0
    %vm315 = vcmp.ge.f32.partialorder %v293, 1.0
    %vm316 = vcmp.ge.f32.partialorder %v296, 1.0
    %vm317 = vcmp.ge.f32.partialorder %v301, 1.0
    %vm318 = vcmp.ge.f32.partialorder %v304, 1.0
    %vm319 = vcmp.ge.f32.partialorder %v309, 1.0
    %vm320 = vcmp.ge.f32.partialorder %v312, 1.0
    %v321 = vsel %vm315, 1, 0
    %v322 = vsel %vm316, 1, 0
    %v323 = vsel %vm317, 1, 0
    %v324 = vsel %vm318, 1, 0
    %v325 = vsel %vm319, 1, 0
    %v326 = vsel %vm320, 1, 0
    %v327 = vcvt.s32.f32 %v321
    %v328 = vcvt.s32.f32 %v322
    %v329 = vcvt.s32.f32 %v323
    %v330 = vcvt.s32.f32 %v324
    %v331 = vcvt.s32.f32 %v325
    %v332 = vcvt.s32.f32 %v326
    %v333 = vpack.c.bf16 %v328, %v327
    %v334 = vpack.c.bf16 %v330, %v329
    %v335 = vpack.c.bf16 %v332, %v331
    %v336 = vld [vmem:[%s1 + $0x18] sm:$0xf]
    %vm337 = vcmask 392192
    %v339 = vsel %vm337, %v336, 0
    %341 = vmatprep.subr.bf16.mxu0 0
    %342 = vmatpush1.bf16.msra.mxu0 %v333
    %343 = vmatprep.subr.bf16.mxu0 0
    %344 = vmatpush1.bf16.msra.mxu0 %v334
    %345 = vmatprep.subr.bf16.mxu0 0
    %346 = vmatpush1.bf16.msra.mxu0 %v335
    %347 = vmatprep.subr.bf16.mxu0 0
    %348 = vmatpush1.bf16.msra.mxu0 0
    %349 = vmatprep.subr.bf16.mxu0 0
    %350 = vmatpush1.bf16.msra.mxu0 0
    %351 = vmatprep.subr.bf16.mxu0 0
    %352 = vmatpush1.bf16.msra.mxu0 0
    %353 = vmatprep.subr.bf16.mxu0 0
    %354 = vmatpush1.bf16.msra.mxu0 0
    %355 = vmatprep.subr.bf16.mxu0 0
    %356 = vmatpush1.bf16.msra.mxu0 0
    %357 = vmatprep.subr.bf16.mxu0 0
    %358 = vmatpush1.bf16.msra.mxu0 0
    %359 = vmatprep.subr.bf16.mxu0 0
    %360 = vmatpush1.bf16.msra.mxu0 0
    %361 = vmatprep.subr.bf16.mxu0 0
    %362 = vmatpush1.bf16.msra.mxu0 0
    %363 = vmatprep.subr.bf16.mxu0 0
    %364 = vmatpush1.bf16.msra.mxu0 0
    %365 = vmatprep.subr.bf16.mxu0 0
    %366 = vmatpush1.bf16.msra.mxu0 0
    %367 = vmatprep.subr.bf16.mxu0 0
    %368 = vmatpush1.bf16.msra.mxu0 0
    %369 = vmatprep.subr.bf16.mxu0 0
    %370 = vmatpush1.bf16.msra.mxu0 0
    %371 = vmatprep.subr.bf16.mxu0 0
    %372 = vmatpush1.bf16.msra.mxu0 0
    %373 = vmatprep.mubr.bf16.mxu0 0
    %374 = vmatmul.mubr.bf16.gmra.mrb[0].mxu0 %v339
    %v375 = vpop.f32.mrb[0].mxu0
    %v376 = vadd.f32 0.0, %v375
    %v377 = vpop.f32.mrb[0].mxu0
    %v378 = vpop.f32.mrb[0].mxu0
    %v379 = vpop.f32.mrb[0].mxu0
    %380 = vdwg.mxu0
    %v381 = vpack.c.bf16 %v376, %v376
    %383 = vrot.lane.b32.xlu0 %v381, 64
    %v384 = vpop.permute.xlu0 %383
    %v387 = vsel %vm176, %v333, %v384
    %v389 = vld [vmem:[%s2 + $0x40] sm:$0xf]
    %v390 = vld [vmem:[%s2 + $0x44] sm:$0xf]
    %v391 = vld [vmem:[%s2 + $0x48] sm:$0xf]
    %v392 = vld [vmem:[%s2 + $0x4c] sm:$0xf]
    %v393 = vld [vmem:[%s2 + $0x50] sm:$0xf]
    %v394 = vld [vmem:[%s2 + $0x54] sm:$0xf]
    %v395 = vld [vmem:[%s2 + $0x58] sm:$0xf]
    %v396 = vld [vmem:[%s2 + $0x5c] sm:$0xf]
    %v397 = vld [vmem:[%s2 + $0x60] sm:$0xf]
    %v398 = vld [vmem:[%s2 + $0x64] sm:$0xf]
    %v399 = vld [vmem:[%s2 + $0x68] sm:$0xf]
    %v400 = vld [vmem:[%s2 + $0x6c] sm:$0xf]
    %v401 = vld [vmem:[%s2 + $0x70] sm:$0xf]
    %v402 = vld [vmem:[%s2 + $0x74] sm:$0xf]
    %v403 = vld [vmem:[%s2 + $0x78] sm:$0xf]
    %v404 = vld [vmem:[%s2 + $0x7c] sm:$0xf]
    %v405 = vld [vmem:[%s3 + $0x1] sm:$0x1]
    %v406 = vlaneseq
    %v407 = vshrl.u32 %v406, 7
    %v408 = vsub.s32 0, %v407
    %v409 = vrot.slane %v405, %v408
    %v426 = vunpack.c.l.b16 %v389
    %v427 = vunpack.c.l.b16 %v390
    %v428 = vunpack.c.l.b16 %v391
    %v429 = vunpack.c.l.b16 %v392
    %v430 = vunpack.c.l.b16 %v393
    %v431 = vunpack.c.l.b16 %v394
    %v432 = vunpack.c.l.b16 %v395
    %v433 = vunpack.c.l.b16 %v396
    %v434 = vunpack.c.l.b16 %v397
    %v435 = vunpack.c.l.b16 %v398
    %v436 = vunpack.c.l.b16 %v399
    %v437 = vunpack.c.l.b16 %v400
    %v438 = vunpack.c.l.b16 %v401
    %v439 = vunpack.c.l.b16 %v402
    %v440 = vunpack.c.l.b16 %v403
    %v441 = vunpack.c.l.b16 %v404
    %v442 = vpack.c.b16 %v427, %v426
    %v443 = vpack.c.b16 %v429, %v428
    %v444 = vpack.c.b16 %v431, %v430
    %v445 = vpack.c.b16 %v433, %v432
    %v446 = vpack.c.b16 %v435, %v434
    %v447 = vpack.c.b16 %v437, %v436
    %v448 = vpack.c.b16 %v439, %v438
    %v449 = vpack.c.b16 %v441, %v440
    %458 = vmatprep.subr.bf16.mxu0 0
    %459 = vmatpush1.bf16.msra.mxu0 %v442
    %460 = vmatprep.subr.bf16.mxu0 0
    %461 = vmatpush1.bf16.msra.mxu0 %v443
    %462 = vmatprep.subr.bf16.mxu0 0
    %463 = vmatpush1.bf16.msra.mxu0 %v444
    %464 = vmatprep.subr.bf16.mxu0 0
    %465 = vmatpush1.bf16.msra.mxu0 %v445
    %466 = vmatprep.subr.bf16.mxu0 0
    %467 = vmatpush1.bf16.msra.mxu0 %v446
    %468 = vmatprep.subr.bf16.mxu0 0
    %469 = vmatpush1.bf16.msra.mxu0 %v447
    %470 = vmatprep.subr.bf16.mxu0 0
    %471 = vmatpush1.bf16.msra.mxu0 %v448
    %472 = vmatprep.subr.bf16.mxu0 0
    %473 = vmatpush1.bf16.msra.mxu0 %v449
    %474 = vmatprep.subr.bf16.mxu0 0
    %475 = vmatpush1.bf16.msra.mxu0 0
    %476 = vmatprep.subr.bf16.mxu0 0
    %477 = vmatpush1.bf16.msra.mxu0 0
    %478 = vmatprep.subr.bf16.mxu0 0
    %479 = vmatpush1.bf16.msra.mxu0 0
    %480 = vmatprep.subr.bf16.mxu0 0
    %481 = vmatpush1.bf16.msra.mxu0 0
    %482 = vmatprep.subr.bf16.mxu0 0
    %483 = vmatpush1.bf16.msra.mxu0 0
    %484 = vmatprep.subr.bf16.mxu0 0
    %485 = vmatpush1.bf16.msra.mxu0 0
    %486 = vmatprep.subr.bf16.mxu0 0
    %487 = vmatpush1.bf16.msra.mxu0 0
    %488 = vmatprep.subr.bf16.mxu0 0
    %489 = vmatpush1.bf16.msra.mxu0 0
    %490 = vmatprep.mubr.bf16.mxu0 0
    %491 = vmatmul.mubr.bf16.gmra.mrb[0].mxu0 %v387
    %v492 = vpop.f32.mrb[0].mxu0
    %v493 = vadd.f32 %v409, %v492
    %v494 = vpop.f32.mrb[0].mxu0
    %v495 = vpop.f32.mrb[0].mxu0
    %v496 = vpop.f32.mrb[0].mxu0
    %497 = vdwg.mxu0
    %vm498 = vcmp.ge.f32.partialorder %v493, 1.0
    %v499 = vsel %vm498, 1, 0
    %v500 = vcvt.s32.f32 %v499
    %v501 = vpack.c.bf16 %v500, %v500
    %v502 = vld [vmem:[%s2 + $0x80] sm:$0xf]
    %v503 = vld [vmem:[%s2 + $0x84] sm:$0xf]
    %v504 = vld [vmem:[%s2 + $0x88] sm:$0xf]
    %v505 = vld [vmem:[%s2 + $0x8c] sm:$0xf]
    %v506 = vld [vmem:[%s2 + $0x90] sm:$0xf]
    %v507 = vld [vmem:[%s2 + $0x94] sm:$0xf]
    %v508 = vld [vmem:[%s2 + $0x98] sm:$0xf]
    %v509 = vld [vmem:[%s2 + $0x9c] sm:$0xf]
    %v510 = vld [vmem:[%s3 + $0x2] sm:$0x1]
    %v511 = vlaneseq
    %v512 = vshrl.u32 %v511, 7
    %v513 = vsub.s32 0, %v512
    %v514 = vrot.slane %v510, %v513
    %v523 = vunpack.c.l.b16 %v502
    %v524 = vunpack.c.l.b16 %v503
    %v525 = vunpack.c.l.b16 %v504
    %v526 = vunpack.c.l.b16 %v505
    %v527 = vunpack.c.l.b16 %v506
    %v528 = vunpack.c.l.b16 %v507
    %v529 = vunpack.c.l.b16 %v508
    %v530 = vunpack.c.l.b16 %v509
    %v531 = vpack.c.b16 %v524, %v523
    %v532 = vpack.c.b16 %v526, %v525
    %v533 = vpack.c.b16 %v528, %v527
    %v534 = vpack.c.b16 %v530, %v529
    %v540 = vsel %vm176, %v501, 0
    %542 = vmatprep.subr.bf16.mxu0 0
    %543 = vmatpush1.bf16.msra.mxu0 %v531
    %544 = vmatprep.subr.bf16.mxu0 0
    %545 = vmatpush1.bf16.msra.mxu0 %v532
    %546 = vmatprep.subr.bf16.mxu0 0
    %547 = vmatpush1.bf16.msra.mxu0 %v533
    %548 = vmatprep.subr.bf16.mxu0 0
    %549 = vmatpush1.bf16.msra.mxu0 %v534
    %550 = vmatprep.subr.bf16.mxu0 0
    %551 = vmatpush1.bf16.msra.mxu0 0
    %552 = vmatprep.subr.bf16.mxu0 0
    %553 = vmatpush1.bf16.msra.mxu0 0
    %554 = vmatprep.subr.bf16.mxu0 0
    %555 = vmatpush1.bf16.msra.mxu0 0
    %556 = vmatprep.subr.bf16.mxu0 0
    %557 = vmatpush1.bf16.msra.mxu0 0
    %558 = vmatprep.subr.bf16.mxu0 0
    %559 = vmatpush1.bf16.msra.mxu0 0
    %560 = vmatprep.subr.bf16.mxu0 0
    %561 = vmatpush1.bf16.msra.mxu0 0
    %562 = vmatprep.subr.bf16.mxu0 0
    %563 = vmatpush1.bf16.msra.mxu0 0
    %564 = vmatprep.subr.bf16.mxu0 0
    %565 = vmatpush1.bf16.msra.mxu0 0
    %566 = vmatprep.subr.bf16.mxu0 0
    %567 = vmatpush1.bf16.msra.mxu0 0
    %568 = vmatprep.subr.bf16.mxu0 0
    %569 = vmatpush1.bf16.msra.mxu0 0
    %570 = vmatprep.subr.bf16.mxu0 0
    %571 = vmatpush1.bf16.msra.mxu0 0
    %572 = vmatprep.subr.bf16.mxu0 0
    %573 = vmatpush1.bf16.msra.mxu0 0
    %574 = vmatprep.mubr.bf16.mxu0 0
    %575 = vmatmul.mubr.bf16.gmra.mrb[0].mxu0 %v540
    %v576 = vpop.f32.mrb[0].mxu0
    %v577 = vadd.f32 %v514, %v576
    %v578 = vpop.f32.mrb[0].mxu0
    %v579 = vpop.f32.mrb[0].mxu0
    %v580 = vpop.f32.mrb[0].mxu0
    %581 = vdwg.mxu0
    %vm582 = vcmask 130048
    %583 = vst.msk [vmem:[#allocation2] sm:$0xff] %vm582, %v577
    // Predicated region
    $region18: #{spikenet_forward.1} parent=1 // pred_check
      _
    $region19: #{spikenet_forward.1} parent=1 // pred_check_branch
      %585 = sbr.rel (0) target = $region21
    $region20: #{spikenet_forward.1} parent=1 // pred_region
      %s587 = ssub.s32 128, 128
      %588 = vsyncadd [#allocation3], %s587
      %s590 = sshll.u32 [#allocation2], 4
      %s591 = int_to_ptr.vmem [resolvable:$true] %s590
      %593 = dma.vmem_to_hbm [thread:$0]  %s591, 128, %s4, [#allocation3]
    $region21: #{spikenet_forward.1} parent=1 // pred_fallthru
      _
    // Predicated region
    $region22: #{spikenet_forward.1} parent=1 // pred_check
      _
    $region23: #{spikenet_forward.1} parent=1 // pred_check_branch
      %595 = sbr.rel (0) target = $region25
    $region24: #{spikenet_forward.1} parent=1 // pred_region
      %596 = dma.done [#allocation3], 128
    $region25: #{spikenet_forward.1} parent=1 // pred_fallthru
      _
    %597 = vsyncpa [#allocation3], 1

</llo_original>
